<compile_context>
chip_gen: v7x
topology: tpu7x:2x2x1
jax: 0.10.0
libtpu: 0.0.40
codegen_flags: <defaults>
</compile_context>

<pallas_src>
import jax
import jax.numpy as jnp
from jax import lax
from jax.experimental import pallas as pl
from jax.experimental.pallas import tpu as pltpu

LN_EPS = 1e-5


def residual_block_kernel(x_ref, w1_ref, w2_ref, p_ref, o_ref):
    # fc1: (TB, D) @ (D, D); w1 is pre-transposed to (in, out).
    x_bf = x_ref[...].astype(jnp.bfloat16)
    h = jnp.dot(x_bf, w1_ref[...], preferred_element_type=jnp.float32)
    h = jnp.maximum(h + p_ref[0:1, :], 0.0)                 # bias + ReLU (f32)

    # fc2 (bf16 MXU inputs, f32 accumulate)
    out = jnp.dot(h.astype(jnp.bfloat16), w2_ref[...],
                  preferred_element_type=jnp.float32)
    # residual re-read from VMEM (don't hold f32 x live across both matmuls)
    out = out + p_ref[1:2, :] + x_ref[...]

    # LayerNorm over last dim (biased variance, matches torch.nn.LayerNorm).
    mean = jnp.mean(out, axis=-1, keepdims=True)
    centered = out - mean
    var = jnp.mean(centered * centered, axis=-1, keepdims=True)
    normed = centered * lax.rsqrt(var + LN_EPS)
    normed = normed * p_ref[2:3, :] + p_ref[3:4, :]

    o_ref[...] = jnp.maximum(normed, 0.0)                    # final ReLU


def prepare_params(w1, b1, w2, b2, gamma, beta):
    """One-time parameter prep (do this OUTSIDE the hot path / cache it):
    PyTorch (out, in) weights -> (in, out) bf16; pack the four (D,) vectors
    into one (4, D) f32 array [b1, b2, gamma, beta]."""
    w1t = jnp.asarray(w1, jnp.float32).T.astype(jnp.bfloat16)
    w2t = jnp.asarray(w2, jnp.float32).T.astype(jnp.bfloat16)
    packed = jnp.stack([jnp.asarray(b1, jnp.float32),
                        jnp.asarray(b2, jnp.float32),
                        jnp.asarray(gamma, jnp.float32),
                        jnp.asarray(beta, jnp.float32)], axis=0)
    return w1t, w2t, packed


def _pick_tile_b(B, D):
    """Largest multiple-of-8 divisor of B whose f32 tile is ~<=1 MiB, capped at
    1024 rows, and <= B//2 when possible so the grid has >= 2 parallel steps."""
    target = max(8, min(1024, (1 << 20) // (4 * D)))
    target -= target % 8
    cap = min(target, B // 2) if B >= 16 else B
    cap = max(cap, 8)
    best = B if B % 8 else 8
    for t in range(8, cap + 1, 8):
        if B % t == 0:
            best = t
    return best


def _build_call(B_pad, D, tile_b, vmem_limit, cost, single_buffer_consts):
    row_spec = pl.BlockSpec((tile_b, D), lambda i: (i, 0))
    if single_buffer_consts:
        const_mat = pl.BlockSpec((D, D), lambda i: (0, 0),
                                 pipeline_mode=pl.Buffered(1))
        const_vec = pl.BlockSpec((4, D), lambda i: (0, 0),
                                 pipeline_mode=pl.Buffered(1))
    else:
        const_mat = pl.BlockSpec((D, D), lambda i: (0, 0))
        const_vec = pl.BlockSpec((4, D), lambda i: (0, 0))

    return pl.pallas_call(
        residual_block_kernel,
        out_shape=jax.ShapeDtypeStruct((B_pad, D), jnp.float32),
        grid_spec=pl.GridSpec(
            grid=(B_pad // tile_b,),
            in_specs=[row_spec, const_mat, const_mat, const_vec],
            out_specs=row_spec,
        ),
        compiler_params=pltpu.CompilerParams(
            dimension_semantics=("parallel",),
            vmem_limit_bytes=vmem_limit,
        ),
        cost_estimate=cost,
    )


def residual_block(x, w1t, w2t, params):
    """x: (B, D) f32.  w1t/w2t: (in, out) bf16 from prepare_params().
    params: (4, D) f32 [b1, b2, gamma, beta]."""
    B, D = x.shape
    assert w1t.shape == (D, D) and w2t.shape == (D, D) and params.shape == (4, D)

    # Pad batch to a multiple of 8 so every block satisfies the (8, 128) rule.
    B_pad = ((B + 7) // 8) * 8
    x_p = x if B_pad == B else jnp.pad(x, ((0, B_pad - B), (0, 0)))
    tile_b = _pick_tile_b(B_pad, D)

    # VMEM budget: single-buffered resident bf16 weights + double-buffered f32
    # x/out tiles + packed params; clamp to ~80% of this chip's physical VMEM.
    vmem_bytes = (2 * D * D * 2            # w1t + w2t, bf16, single-buffered
                  + 2 * 2 * tile_b * D * 4  # x in + out, f32, double-buffered
                  + 2 * 4 * D * 4)          # packed params
    try:
        phys_vmem = pltpu.get_tpu_info().vmem_capacity_bytes
    except Exception:
        phys_vmem = 64 * 1024 * 1024        # v7x floor
    vmem_limit = min(max(int(vmem_bytes * 1.25) + (1 << 20), 32 * 1024 * 1024),
                     int(phys_vmem * 0.8))

    cost = pl.CostEstimate(
        flops=2 * 2 * B_pad * D * D,                          # two (B,D)x(D,D)
        transcendentals=B_pad,                                # one rsqrt / row
        bytes_accessed=2 * B_pad * D * 4 + 2 * D * D * 2 + 4 * D * 4,
    )

    # TODO(synk): add a K/N-tiled reduction-grid path (accumulator + pl.when
    # init/finalize) for D large enough that resident (D, D) bf16 weights no
    # longer fit v7x's 64 MiB VMEM.

    try:
        out = _build_call(B_pad, D, tile_b, vmem_limit, cost, True)(
            x_p, w1t, w2t, params)
    except Exception:
        # Fallback if this JAX build rejects Buffered(1) for constant blocks.
        out = _build_call(B_pad, D, tile_b, vmem_limit, cost, False)(
            x_p, w1t, w2t, params)

    return out if B_pad == B else out[:B]


if __name__ == "__main__":
    B, D = 64, 128   # small demo shape; D lane-aligned, grid of 2 x 32-row tiles

    key = jax.random.PRNGKey(0)
    kx, kw1, kb1, kw2, kb2 = jax.random.split(key, 5)

    x = jax.random.normal(kx, (B, D), dtype=jnp.float32)

    # PyTorch Linear-style parameters, shape (out, in).
    bound = 1.0 / (D ** 0.5)
    w1 = jax.random.uniform(kw1, (D, D), jnp.float32, -bound, bound)
    b1 = jax.random.uniform(kb1, (D,), jnp.float32, -bound, bound)
    w2 = jax.random.uniform(kw2, (D, D), jnp.float32, -bound, bound)
    b2 = jax.random.uniform(kb2, (D,), jnp.float32, -bound, bound)
    gamma = jnp.ones((D,), jnp.float32)   # LayerNorm weight init
    beta = jnp.zeros((D,), jnp.float32)   # LayerNorm bias init

    # One-time parameter prep (transpose + bf16 cast + pack), outside hot path.
    w1t, w2t, packed = prepare_params(w1, b1, w2, b2, gamma, beta)

    out = residual_block(x, w1t, w2t, packed)
    jax.block_until_ready(out)

    # Pure-JAX reference using the same bf16 matmul inputs / f32 accumulation.
    xb = x.astype(jnp.bfloat16)
    h_ref = jnp.maximum(
        jnp.dot(xb, w1t, preferred_element_type=jnp.float32) + b1, 0.0)
    o_mid = jnp.dot(h_ref.astype(jnp.bfloat16), w2t,
                    preferred_element_type=jnp.float32) + b2 + x
    mu = o_mid.mean(-1, keepdims=True)
    var = ((o_mid - mu) ** 2).mean(-1, keepdims=True)
    ref = jnp.maximum((o_mid - mu) * lax.rsqrt(var + LN_EPS) * gamma + beta, 0.0)

    assert jnp.allclose(out, ref, atol=2e-3, rtol=2e-3), "mismatch vs reference"

    print("KERNEL_OK")
</pallas_src>

<mosaic_0001>
module attributes {stable_mosaic.version = 11 : i64} {
  func.func @residual_block_kernel(%arg0: i32, %arg1: memref<32x128xf32, #tpu.memory_space<vmem>>, %arg2: memref<128x128xbf16, #tpu.memory_space<vmem>>, %arg3: memref<128x128xbf16, #tpu.memory_space<vmem>>, %arg4: memref<4x128xf32, #tpu.memory_space<vmem>>, %arg5: memref<32x128xf32, #tpu.memory_space<vmem>>) attributes {dimension_semantics = [#tpu.dimension_semantics<parallel>], iteration_bounds = array<i64: 2>, scalar_prefetch = 0 : i64, scratch_operands = 0 : i64, tpu.core_type = #tpu.core_type<tc>, window_params = [{transform_indices = @transform_0, window_bounds = array<i64: 32, 128>}, {pipeline_mode = #tpu.pipeline_mode<synchronous>, transform_indices = @transform_1, window_bounds = array<i64: 128, 128>}, {pipeline_mode = #tpu.pipeline_mode<synchronous>, transform_indices = @transform_2, window_bounds = array<i64: 128, 128>}, {pipeline_mode = #tpu.pipeline_mode<synchronous>, transform_indices = @transform_3, window_bounds = array<i64: 4, 128>}, {transform_indices = @transform_4, window_bounds = array<i64: 32, 128>}]} {
    %c0 = arith.constant 0 : index
    %c0_0 = arith.constant 0 : index
    %0 = vector.load %arg1[%c0, %c0_0] : memref<32x128xf32, #tpu.memory_space<vmem>>, vector<32x128xf32>
    %1 = arith.truncf %0 : vector<32x128xf32> to vector<32x128xbf16>
    %c0_1 = arith.constant 0 : index
    %c0_2 = arith.constant 0 : index
    %2 = vector.load %arg2[%c0_1, %c0_2] : memref<128x128xbf16, #tpu.memory_space<vmem>>, vector<128x128xbf16>
    %cst = arith.constant dense<0.000000e+00> : vector<32x128xf32>
    %3 = tpu.matmul %1, %2, %cst {dimension_numbers = #tpu.dot_dimension_numbers<[1], [0], [0], [1], [0, 0, 1, 1], [], []>} : vector<32x128xbf16>, vector<128x128xbf16>, vector<32x128xf32> -> vector<32x128xf32>
    %c0_3 = arith.constant 0 : index
    %c0_4 = arith.constant 0 : index
    %4 = vector.load %arg4[%c0_3, %c0_4] : memref<4x128xf32, #tpu.memory_space<vmem>>, vector<1x128xf32>
    %5 = vector.broadcast %4 : vector<1x128xf32> to vector<32x128xf32>
    %6 = arith.addf %3, %5 : vector<32x128xf32>
    %cst_5 = arith.constant 0.000000e+00 : f32
    %7 = vector.broadcast %cst_5 : f32 to vector<32x128xf32>
    %8 = arith.maximumf %6, %7 : vector<32x128xf32>
    %9 = arith.truncf %8 : vector<32x128xf32> to vector<32x128xbf16>
    %c0_6 = arith.constant 0 : index
    %c0_7 = arith.constant 0 : index
    %10 = vector.load %arg3[%c0_6, %c0_7] : memref<128x128xbf16, #tpu.memory_space<vmem>>, vector<128x128xbf16>
    %cst_8 = arith.constant dense<0.000000e+00> : vector<32x128xf32>
    %11 = tpu.matmul %9, %10, %cst_8 {dimension_numbers = #tpu.dot_dimension_numbers<[1], [0], [0], [1], [0, 0, 1, 1], [], []>} : vector<32x128xbf16>, vector<128x128xbf16>, vector<32x128xf32> -> vector<32x128xf32>
    %c1 = arith.constant 1 : index
    %c0_9 = arith.constant 0 : index
    %12 = vector.load %arg4[%c1, %c0_9] : memref<4x128xf32, #tpu.memory_space<vmem>>, vector<1x128xf32>
    %13 = vector.broadcast %12 : vector<1x128xf32> to vector<32x128xf32>
    %14 = arith.addf %11, %13 : vector<32x128xf32>
    %c0_10 = arith.constant 0 : index
    %c0_11 = arith.constant 0 : index
    %15 = vector.load %arg1[%c0_10, %c0_11] : memref<32x128xf32, #tpu.memory_space<vmem>>, vector<32x128xf32>
    %16 = arith.addf %14, %15 : vector<32x128xf32>
    %cst_12 = arith.constant dense<0.000000e+00> : vector<32xf32>
    %17 = vector.multi_reduction <add>, %16, %cst_12 [1] : vector<32x128xf32> to vector<32xf32>
    %18 = vector.shape_cast %17 : vector<32xf32> to vector<32x1xf32>
    %cst_13 = arith.constant 1.280000e+02 : f32
    %19 = vector.broadcast %cst_13 : f32 to vector<32x1xf32>
    %20 = arith.divf %18, %19 : vector<32x1xf32>
    %21 = vector.broadcast %20 : vector<32x1xf32> to vector<32x128xf32>
    %22 = arith.subf %16, %21 : vector<32x128xf32>
    %23 = arith.mulf %22, %22 : vector<32x128xf32>
    %cst_14 = arith.constant dense<0.000000e+00> : vector<32xf32>
    %24 = vector.multi_reduction <add>, %23, %cst_14 [1] : vector<32x128xf32> to vector<32xf32>
    %25 = vector.shape_cast %24 : vector<32xf32> to vector<32x1xf32>
    %cst_15 = arith.constant 1.280000e+02 : f32
    %26 = vector.broadcast %cst_15 : f32 to vector<32x1xf32>
    %27 = arith.divf %25, %26 : vector<32x1xf32>
    %cst_16 = arith.constant 9.99999974E-6 : f32
    %28 = vector.broadcast %cst_16 : f32 to vector<32x1xf32>
    %29 = arith.addf %27, %28 : vector<32x1xf32>
    %30 = math.rsqrt %29 : vector<32x1xf32>
    %31 = vector.broadcast %30 : vector<32x1xf32> to vector<32x128xf32>
    %32 = arith.mulf %22, %31 : vector<32x128xf32>
    %c2 = arith.constant 2 : index
    %c0_17 = arith.constant 0 : index
    %33 = vector.load %arg4[%c2, %c0_17] : memref<4x128xf32, #tpu.memory_space<vmem>>, vector<1x128xf32>
    %34 = vector.broadcast %33 : vector<1x128xf32> to vector<32x128xf32>
    %35 = arith.mulf %32, %34 : vector<32x128xf32>
    %c3 = arith.constant 3 : index
    %c0_18 = arith.constant 0 : index
    %36 = vector.load %arg4[%c3, %c0_18] : memref<4x128xf32, #tpu.memory_space<vmem>>, vector<1x128xf32>
    %37 = vector.broadcast %36 : vector<1x128xf32> to vector<32x128xf32>
    %38 = arith.addf %35, %37 : vector<32x128xf32>
    %cst_19 = arith.constant 0.000000e+00 : f32
    %39 = vector.broadcast %cst_19 : f32 to vector<32x128xf32>
    %40 = arith.maximumf %38, %39 : vector<32x128xf32>
    %c0_20 = arith.constant 0 : index
    %c0_21 = arith.constant 0 : index
    %41 = vector.load %arg5[%c0_20, %c0_21] : memref<32x128xf32, #tpu.memory_space<vmem>>, vector<32x128xf32>
    tpu.vector_store %arg5[%c0_20, %c0_21], %40 {strides = array<i32>} : memref<32x128xf32, #tpu.memory_space<vmem>>, vector<32x128xf32>,
    return
  }
  func.func @transform_0(%arg0: i32) -> (i32, i32) {
    %c0_i32 = arith.constant 0 : i32
    %c0_i32_0 = arith.constant 0 : i32
    return %arg0, %c0_i32 : i32, i32
  }
  func.func @transform_1(%arg0: i32) -> (i32, i32) {
    %c0_i32 = arith.constant 0 : i32
    %c0_i32_0 = arith.constant 0 : i32
    %c0_i32_1 = arith.constant 0 : i32
    return %c0_i32, %c0_i32_0 : i32, i32
  }
  func.func @transform_2(%arg0: i32) -> (i32, i32) {
    %c0_i32 = arith.constant 0 : i32
    %c0_i32_0 = arith.constant 0 : i32
    %c0_i32_1 = arith.constant 0 : i32
    return %c0_i32, %c0_i32_0 : i32, i32
  }
  func.func @transform_3(%arg0: i32) -> (i32, i32) {
    %c0_i32 = arith.constant 0 : i32
    %c0_i32_0 = arith.constant 0 : i32
    %c0_i32_1 = arith.constant 0 : i32
    return %c0_i32, %c0_i32_0 : i32, i32
  }
  func.func @transform_4(%arg0: i32) -> (i32, i32) {
    %c0_i32 = arith.constant 0 : i32
    %c0_i32_0 = arith.constant 0 : i32
    return %arg0, %c0_i32 : i32, i32
  }
}

module attributes {stable_mosaic.version = 11 : i64} {
  func.func @residual_block_kernel(%arg0: i32, %arg1: memref<32x128xf32, #tpu.memory_space<vmem>>, %arg2: memref<128x128xbf16, #tpu.memory_space<vmem>>, %arg3: memref<128x128xbf16, #tpu.memory_space<vmem>>, %arg4: memref<4x128xf32, #tpu.memory_space<vmem>>, %arg5: memref<32x128xf32, #tpu.memory_space<vmem>>) attributes {dimension_semantics = [#tpu.dimension_semantics<parallel>], iteration_bounds = array<i64: 2>, scalar_prefetch = 0 : i64, scratch_operands = 0 : i64, tpu.core_type = #tpu.core_type<tc>, window_params = [{transform_indices = @transform_0, window_bounds = array<i64: 32, 128>}, {pipeline_mode = #tpu.pipeline_mode<synchronous>, transform_indices = @transform_1, window_bounds = array<i64: 128, 128>}, {pipeline_mode = #tpu.pipeline_mode<synchronous>, transform_indices = @transform_2, window_bounds = array<i64: 128, 128>}, {pipeline_mode = #tpu.pipeline_mode<synchronous>, transform_indices = @transform_3, window_bounds = array<i64: 4, 128>}, {transform_indices = @transform_4, window_bounds = array<i64: 32, 128>}]} {
    %c0 = arith.constant 0 : index
    %c0_0 = arith.constant 0 : index
    %0 = vector.load %arg1[%c0, %c0_0] : memref<32x128xf32, #tpu.memory_space<vmem>>, vector<32x128xf32>
    %1 = arith.truncf %0 : vector<32x128xf32> to vector<32x128xbf16>
    %c0_1 = arith.constant 0 : index
    %c0_2 = arith.constant 0 : index
    %2 = vector.load %arg2[%c0_1, %c0_2] : memref<128x128xbf16, #tpu.memory_space<vmem>>, vector<128x128xbf16>
    %cst = arith.constant dense<0.000000e+00> : vector<32x128xf32>
    %3 = tpu.matmul %1, %2, %cst {dimension_numbers = #tpu.dot_dimension_numbers<[1], [0], [0], [1], [0, 0, 1, 1], [], []>} : vector<32x128xbf16>, vector<128x128xbf16>, vector<32x128xf32> -> vector<32x128xf32>
    %c0_3 = arith.constant 0 : index
    %c0_4 = arith.constant 0 : index
    %4 = vector.load %arg4[%c0_3, %c0_4] : memref<4x128xf32, #tpu.memory_space<vmem>>, vector<1x128xf32>
    %5 = vector.broadcast %4 : vector<1x128xf32> to vector<32x128xf32>
    %6 = arith.addf %3, %5 : vector<32x128xf32>
    %cst_5 = arith.constant 0.000000e+00 : f32
    %7 = vector.broadcast %cst_5 : f32 to vector<32x128xf32>
    %8 = arith.maximumf %6, %7 : vector<32x128xf32>
    %9 = arith.truncf %8 : vector<32x128xf32> to vector<32x128xbf16>
    %c0_6 = arith.constant 0 : index
    %c0_7 = arith.constant 0 : index
    %10 = vector.load %arg3[%c0_6, %c0_7] : memref<128x128xbf16, #tpu.memory_space<vmem>>, vector<128x128xbf16>
    %cst_8 = arith.constant dense<0.000000e+00> : vector<32x128xf32>
    %11 = tpu.matmul %9, %10, %cst_8 {dimension_numbers = #tpu.dot_dimension_numbers<[1], [0], [0], [1], [0, 0, 1, 1], [], []>} : vector<32x128xbf16>, vector<128x128xbf16>, vector<32x128xf32> -> vector<32x128xf32>
    %c1 = arith.constant 1 : index
    %c0_9 = arith.constant 0 : index
    %12 = vector.load %arg4[%c1, %c0_9] : memref<4x128xf32, #tpu.memory_space<vmem>>, vector<1x128xf32>
    %13 = vector.broadcast %12 : vector<1x128xf32> to vector<32x128xf32>
    %14 = arith.addf %11, %13 : vector<32x128xf32>
    %c0_10 = arith.constant 0 : index
    %c0_11 = arith.constant 0 : index
    %15 = vector.load %arg1[%c0_10, %c0_11] : memref<32x128xf32, #tpu.memory_space<vmem>>, vector<32x128xf32>
    %16 = arith.addf %14, %15 : vector<32x128xf32>
    %cst_12 = arith.constant dense<0.000000e+00> : vector<32xf32>
    %17 = vector.multi_reduction <add>, %16, %cst_12 [1] : vector<32x128xf32> to vector<32xf32>
    %18 = vector.shape_cast %17 : vector<32xf32> to vector<32x1xf32>
    %cst_13 = arith.constant 1.280000e+02 : f32
    %19 = vector.broadcast %cst_13 : f32 to vector<32x1xf32>
    %20 = arith.divf %18, %19 : vector<32x1xf32>
    %21 = vector.broadcast %20 : vector<32x1xf32> to vector<32x128xf32>
    %22 = arith.subf %16, %21 : vector<32x128xf32>
    %23 = arith.mulf %22, %22 : vector<32x128xf32>
    %cst_14 = arith.constant dense<0.000000e+00> : vector<32xf32>
    %24 = vector.multi_reduction <add>, %23, %cst_14 [1] : vector<32x128xf32> to vector<32xf32>
    %25 = vector.shape_cast %24 : vector<32xf32> to vector<32x1xf32>
    %cst_15 = arith.constant 1.280000e+02 : f32
    %26 = vector.broadcast %cst_15 : f32 to vector<32x1xf32>
    %27 = arith.divf %25, %26 : vector<32x1xf32>
    %cst_16 = arith.constant 9.99999974E-6 : f32
    %28 = vector.broadcast %cst_16 : f32 to vector<32x1xf32>
    %29 = arith.addf %27, %28 : vector<32x1xf32>
    %30 = math.rsqrt %29 : vector<32x1xf32>
    %31 = vector.broadcast %30 : vector<32x1xf32> to vector<32x128xf32>
    %32 = arith.mulf %22, %31 : vector<32x128xf32>
    %c2 = arith.constant 2 : index
    %c0_17 = arith.constant 0 : index
    %33 = vector.load %arg4[%c2, %c0_17] : memref<4x128xf32, #tpu.memory_space<vmem>>, vector<1x128xf32>
    %34 = vector.broadcast %33 : vector<1x128xf32> to vector<32x128xf32>
    %35 = arith.mulf %32, %34 : vector<32x128xf32>
    %c3 = arith.constant 3 : index
    %c0_18 = arith.constant 0 : index
    %36 = vector.load %arg4[%c3, %c0_18] : memref<4x128xf32, #tpu.memory_space<vmem>>, vector<1x128xf32>
    %37 = vector.broadcast %36 : vector<1x128xf32> to vector<32x128xf32>
    %38 = arith.addf %35, %37 : vector<32x128xf32>
    %cst_19 = arith.constant 0.000000e+00 : f32
    %39 = vector.broadcast %cst_19 : f32 to vector<32x128xf32>
    %40 = arith.maximumf %38, %39 : vector<32x128xf32>
    %c0_20 = arith.constant 0 : index
    %c0_21 = arith.constant 0 : index
    %41 = vector.load %arg5[%c0_20, %c0_21] : memref<32x128xf32, #tpu.memory_space<vmem>>, vector<32x128xf32>
    tpu.vector_store %arg5[%c0_20, %c0_21], %40 {strides = array<i32>} : memref<32x128xf32, #tpu.memory_space<vmem>>, vector<32x128xf32>,
    return
  }
  func.func @transform_0(%arg0: i32) -> (i32, i32) {
    %c0_i32 = arith.constant 0 : i32
    %c0_i32_0 = arith.constant 0 : i32
    return %arg0, %c0_i32 : i32, i32
  }
  func.func @transform_1(%arg0: i32) -> (i32, i32) {
    %c0_i32 = arith.constant 0 : i32
    %c0_i32_0 = arith.constant 0 : i32
    %c0_i32_1 = arith.constant 0 : i32
    return %c0_i32, %c0_i32_0 : i32, i32
  }
  func.func @transform_2(%arg0: i32) -> (i32, i32) {
    %c0_i32 = arith.constant 0 : i32
    %c0_i32_0 = arith.constant 0 : i32
    %c0_i32_1 = arith.constant 0 : i32
    return %c0_i32, %c0_i32_0 : i32, i32
  }
  func.func @transform_3(%arg0: i32) -> (i32, i32) {
    %c0_i32 = arith.constant 0 : i32
    %c0_i32_0 = arith.constant 0 : i32
    %c0_i32_1 = arith.constant 0 : i32
    return %c0_i32, %c0_i32_0 : i32, i32
  }
  func.func @transform_4(%arg0: i32) -> (i32, i32) {
    %c0_i32 = arith.constant 0 : i32
    %c0_i32_0 = arith.constant 0 : i32
    return %arg0, %c0_i32 : i32, i32
  }
}

</mosaic_0001>

<llo_original>
// kernel: tpu_custom_call.1
$region0: #{tpu_custom_call.1}
  #allocation0 [shape = 'u32[]', space=smem, size = 0x4, offset = 0x4, fixed_abs, tag = 'smem constant byte address 0x4 - core index']
  #allocation1 [shape = 'u32[144,128]{1,0:T(1,128)}', space=vmem, size = 0x12000, scoped, tag = 'internal scratch']
  %s0 = inlined_call_operand.hbm [shape: f32[64,128], index: 0, kind: input, shape index: {}]
  %s1 = inlined_call_operand.hbm [shape: bf16[128,128], index: 1, kind: input, shape index: {}]
  %s2 = inlined_call_operand.hbm [shape: bf16[128,128], index: 2, kind: input, shape index: {}]
  %s3 = inlined_call_operand.vmem [shape: f32[4,128], index: 3, kind: input, shape index: {}]
  %s4 = inlined_call_operand.hbm [shape: f32[64,128], index: 4, kind: output, shape index: {}]
  %s5 = sld [smem:[#allocation0]]
  $region61: #{tpu_custom_call.1} parent=0
    _
  %s7 = ssub.s32 1, %s5
  %s8 = scalar_select 0, %s7, %s5
  $region1: #{tpu_custom_call.1} parent=0
    #allocation2 [shape = 'u8[32768]{0}', space=vmem, size = 0x8000, scoped, tag = 'input window, operand 0']
    #allocation3 [shape = 's32[2]{0}', space=sflag, size = 0x8, scoped, tag = 'scoped memory for tpu_custom_call.1']
    #allocation4 [shape = 's32[2]{0}', space=sflag, size = 0x8, scoped, tag = 'scoped memory for tpu_custom_call.1']
    #allocation5 [shape = 'u8[32768]{0}', space=vmem, size = 0x8000, scoped, tag = 'input window, operand 1, single buffered']
    #allocation6 [shape = 's32[1]{0}', space=sflag, size = 0x4, scoped, tag = 'scoped memory for tpu_custom_call.1']
    #allocation7 [shape = 'u8[32768]{0}', space=vmem, size = 0x8000, scoped, tag = 'input window, operand 2, single buffered']
    #allocation8 [shape = 'u8[32768]{0}', space=vmem, size = 0x8000, scoped, tag = 'output window, operand 0']
    %9 = vsyncpa [#allocation3], 0
    %s10 = scalar_lea.sflag [#allocation3], 1
    %11 = vsyncpa %s10, 0
    %12 = vsyncpa [#allocation6], 0
    %13 = vsyncpa [#allocation4], 0
    %s14 = scalar_lea.sflag [#allocation4], 1
    %15 = vsyncpa %s14, 0
    loop: start=0, step=1, limit=4
    $region2: #{tpu_custom_call.1} parent=1 // loop_pre_header
      _
    $region3: #{tpu_custom_call.1} parent=1 // loop_header
      %s17 = sphi 0, %s21
      %p18 = scmp.ge.s32.totalorder %s17, 4
      %s27 = sphi 0, %s29
      %s30 = sphi 0, %s27
      %s31 = sphi 0, %s30
      %s47 = sphi 0, %s31
      %s51 = sphi 0, %s51
      %s53 = sphi 0, %s51
      %s54 = sphi 0, %s53
      %s68 = sphi 0, %s54
      %s72 = sphi 0, %s72
      %s74 = sphi 0, %s72
      %s75 = sphi 0, %s74
      %s89 = sphi 0, %s75
      %s93 = sphi 0, %s93
      %s95 = sphi 0, %s93
      %s96 = sphi 0, %s95
      %s110 = sphi 0, %s96
      %s116 = sphi 0, %s118
      %s119 = sphi 0, %s116
      %s120 = sphi 0, %s119
      %s136 = sphi 0, %s120
    $region4: #{tpu_custom_call.1} parent=1 // loop_header_branch
      %20 = sbr.rel (%p18) target = $region8
    $region5: #{tpu_custom_call.1} parent=1 // loop_body
      %s22 = ssub.s32 %s17, 1
      %s23 = ssub.s32 %s17, 2
      %s24 = sadd.s32 %s17, 1
      %s25 = ssub.s32 %s17, %s24
      %p26 = scmp.eq.s32.totalorder %s25, 0
      %s28 = sadd.s32 %s27, 1
      %s29 = scalar_select %p26, %s27, %s28
      %p32 = pneg %p26
      %p33 = scmp.eq.s32.totalorder %s17, 1
      %p34 = por %p32, %p33
      %p35 = scmp.ne.s32.totalorder %s27, %s30
      %p36 = scmp.eq.s32.totalorder %s17, 0
      %p37 = por %p35, %p36
      %p38 = scmp.ne.s32.totalorder %s27, %s30
      %p39 = scmp.eq.s32.totalorder %s22, 1
      %p40 = por %p38, %p39
      %p41 = scmp.ne.s32.totalorder %s30, %s31
      %p42 = scmp.eq.s32.totalorder %s22, 0
      %p43 = por %p41, %p42
      %p44 = scmp.ne.s32.totalorder %s30, %s31
      %p45 = scmp.eq.s32.totalorder %s23, 1
      %p46 = por %p44, %p45
      %p48 = scmp.ne.s32.totalorder %s31, %s47
      %p49 = scmp.eq.s32.totalorder %s23, 0
      %p50 = por %p48, %p49
      %s52 = sadd.s32 %s51, 1
      %p55 = scmp.eq.s32.totalorder %s17, 1
      %p56 = scmp.ne.s32.totalorder %s51, %s53
      %p57 = scmp.eq.s32.totalorder %s17, 0
      %p58 = por %p56, %p57
      %p59 = scmp.ne.s32.totalorder %s51, %s53
      %p60 = scmp.eq.s32.totalorder %s22, 1
      %p61 = por %p59, %p60
      %p62 = scmp.ne.s32.totalorder %s53, %s54
      %p63 = scmp.eq.s32.totalorder %s22, 0
      %p64 = por %p62, %p63
      %p65 = scmp.ne.s32.totalorder %s53, %s54
      %p66 = scmp.eq.s32.totalorder %s23, 1
      %p67 = por %p65, %p66
      %p69 = scmp.ne.s32.totalorder %s54, %s68
      %p70 = scmp.eq.s32.totalorder %s23, 0
      %p71 = por %p69, %p70
      %s73 = sadd.s32 %s72, 1
      %p76 = scmp.eq.s32.totalorder %s17, 1
      %p77 = scmp.ne.s32.totalorder %s72, %s74
      %p78 = scmp.eq.s32.totalorder %s17, 0
      %p79 = por %p77, %p78
      %p80 = scmp.ne.s32.totalorder %s72, %s74
      %p81 = scmp.eq.s32.totalorder %s22, 1
      %p82 = por %p80, %p81
      %p83 = scmp.ne.s32.totalorder %s74, %s75
      %p84 = scmp.eq.s32.totalorder %s22, 0
      %p85 = por %p83, %p84
      %p86 = scmp.ne.s32.totalorder %s74, %s75
      %p87 = scmp.eq.s32.totalorder %s23, 1
      %p88 = por %p86, %p87
      %p90 = scmp.ne.s32.totalorder %s75, %s89
      %p91 = scmp.eq.s32.totalorder %s23, 0
      %p92 = por %p90, %p91
      %s94 = sadd.s32 %s93, 1
      %p97 = scmp.eq.s32.totalorder %s17, 1
      %p98 = scmp.ne.s32.totalorder %s93, %s95
      %p99 = scmp.eq.s32.totalorder %s17, 0
      %p100 = por %p98, %p99
      %p101 = scmp.ne.s32.totalorder %s93, %s95
      %p102 = scmp.eq.s32.totalorder %s22, 1
      %p103 = por %p101, %p102
      %p104 = scmp.ne.s32.totalorder %s95, %s96
      %p105 = scmp.eq.s32.totalorder %s22, 0
      %p106 = por %p104, %p105
      %p107 = scmp.ne.s32.totalorder %s95, %s96
      %p108 = scmp.eq.s32.totalorder %s23, 1
      %p109 = por %p107, %p108
      %p111 = scmp.ne.s32.totalorder %s96, %s110
      %p112 = scmp.eq.s32.totalorder %s23, 0
      %p113 = por %p111, %p112
      %s114 = ssub.s32 %s17, %s24
      %p115 = scmp.eq.s32.totalorder %s114, 0
      %s117 = sadd.s32 %s116, 1
      %s118 = scalar_select %p115, %s116, %s117
      %p121 = pneg %p115
      %p122 = scmp.eq.s32.totalorder %s17, 1
      %p123 = por %p121, %p122
      %p124 = scmp.ne.s32.totalorder %s116, %s119
      %p125 = scmp.eq.s32.totalorder %s17, 0
      %p126 = por %p124, %p125
      %p127 = scmp.ne.s32.totalorder %s116, %s119
      %p128 = scmp.eq.s32.totalorder %s22, 1
      %p129 = por %p127, %p128
      %p130 = scmp.ne.s32.totalorder %s119, %s120
      %p131 = scmp.eq.s32.totalorder %s22, 0
      %p132 = por %p130, %p131
      %p133 = scmp.ne.s32.totalorder %s119, %s120
      %p134 = scmp.eq.s32.totalorder %s23, 1
      %p135 = por %p133, %p134
      %p137 = scmp.ne.s32.totalorder %s120, %s136
      %p138 = scmp.eq.s32.totalorder %s23, 0
      %p139 = por %p137, %p138
      %p140 = scmp.le.s32.totalorder 1, %s17
      %p141 = scmp.lt.s32.totalorder %s17, 3
      %p142 = pnand %p140, %p141
      %p143 = pneg %p142
      // Predicated region
      $region9: #{tpu_custom_call.1} parent=5 // pred_check
        _
      $region10: #{tpu_custom_call.1} parent=5 // pred_check_branch
        %145 = sbr.rel (%p142) target = $region12
      $region11: #{tpu_custom_call.1} parent=5 // pred_region
        %s146 = ssub.s32 %s17, 1
        // Predicated region
        $region13: #{tpu_custom_call.1} parent=11 // pred_check
          %p147 = pneg %p64
        $region14: #{tpu_custom_call.1} parent=11 // pred_check_branch
          %149 = sbr.rel (%p147) target = $region16
        $region15: #{tpu_custom_call.1} parent=11 // pred_region
          %s151 = ssub.s32 1024, 1024
          %152 = vsyncadd [#allocation6], %s151
          %s153 = sshll.u32 [#allocation5], 4
          %s154 = int_to_ptr.vmem [resolvable:$true] %s153
          %159 = dma.hbm_to_vmem [thread:$0]  %s1, 1024, %s154, [#allocation6], 64, 64, 4
        $region16: #{tpu_custom_call.1} parent=11 // pred_fallthru
          _
        // Predicated region
        $region17: #{tpu_custom_call.1} parent=11 // pred_check
          %p160 = pneg %p85
        $region18: #{tpu_custom_call.1} parent=11 // pred_check_branch
          %162 = sbr.rel (%p160) target = $region20
        $region19: #{tpu_custom_call.1} parent=11 // pred_region
          %s164 = ssub.s32 1024, 1024
          %165 = vsyncadd [#allocation6], %s164
          %s166 = sshll.u32 [#allocation7], 4
          %s167 = int_to_ptr.vmem [resolvable:$true] %s166
          %172 = dma.hbm_to_vmem [thread:$0]  %s2, 1024, %s167, [#allocation6], 64, 64, 4
        $region20: #{tpu_custom_call.1} parent=11 // pred_fallthru
          _
        // Predicated region
        $region21: #{tpu_custom_call.1} parent=11 // pred_check
          %p173 = pneg %p106
        $region22: #{tpu_custom_call.1} parent=11 // pred_check_branch
          %175 = sbr.rel (%p173) target = $region24
        $region23: #{tpu_custom_call.1} parent=11 // pred_region
          _
        $region24: #{tpu_custom_call.1} parent=11 // pred_fallthru
          _
      $region12: #{tpu_custom_call.1} parent=5 // pred_fallthru
        _
      %p176 = scmp.lt.s32.totalorder %s17, 2
      // Predicated region
      $region25: #{tpu_custom_call.1} parent=5 // pred_check
        %p177 = pneg %p176
      $region26: #{tpu_custom_call.1} parent=5 // pred_check_branch
        %179 = sbr.rel (%p177) target = $region28
      $region27: #{tpu_custom_call.1} parent=5 // pred_region
        // Predicated region
        $region29: #{tpu_custom_call.1} parent=27 // pred_check
          %p180 = pneg %p37
        $region30: #{tpu_custom_call.1} parent=27 // pred_check_branch
          %182 = sbr.rel (%p180) target = $region32
        $region31: #{tpu_custom_call.1} parent=27 // pred_region
          %s183 = sand.u32 %s27, 1
          %s184 = scalar_lea.sflag [#allocation3], %s183
          %s185 = sand.u32 %s27, 1
          %s186 = smul.addr %s185, 32
          %s187 = scalar_lea.vmem [#allocation2], %s186
          %s188 = smul.u32 4, %s17
          %s190 = ssub.s32 512, 512
          %191 = vsyncadd %s184, %s190
          %s192 = smul.addr %s188, 128
          %s193 = scalar_lea.hbm %s0, %s192
          %s194 = sshll.u32 %s187, 4
          %s195 = int_to_ptr.vmem [resolvable:$true] %s194
          %200 = dma.hbm_to_vmem [thread:$0]  %s193, 512, %s195, %s184, 128, 128, 8
        $region32: #{tpu_custom_call.1} parent=27 // pred_fallthru
          _
      $region28: #{tpu_custom_call.1} parent=5 // pred_fallthru
        _
      %p201 = scmp.le.s32.totalorder 1, %s17
      %p202 = scmp.lt.s32.totalorder %s17, 3
      %p203 = pnand %p201, %p202
      %p204 = pneg %p203
      // Predicated region
      $region33: #{tpu_custom_call.1} parent=5 // pred_check
        _
      $region34: #{tpu_custom_call.1} parent=5 // pred_check_branch
        %206 = sbr.rel (%p203) target = $region36
      $region35: #{tpu_custom_call.1} parent=5 // pred_region
        %s207 = ssub.s32 %s17, 1
        %s208 = sand.u32 %s30, 1
        %s209 = scalar_lea.sflag [#allocation3], %s208
        %s210 = sand.u32 %s30, 1
        %s211 = smul.addr %s210, 32
        %s212 = scalar_lea.vmem [#allocation2], %s211
        // Predicated region
        $region37: #{tpu_custom_call.1} parent=35 // pred_check
          %p213 = pneg %p43
        $region38: #{tpu_custom_call.1} parent=35 // pred_check_branch
          %215 = sbr.rel (%p213) target = $region40
        $region39: #{tpu_custom_call.1} parent=35 // pred_region
          %216 = dma.done %s209, 512
        $region40: #{tpu_custom_call.1} parent=35 // pred_fallthru
          _
        // Predicated region
        $region41: #{tpu_custom_call.1} parent=35 // pred_check
          %p217 = pneg %p64
        $region42: #{tpu_custom_call.1} parent=35 // pred_check_branch
          %219 = sbr.rel (%p217) target = $region44
        $region43: #{tpu_custom_call.1} parent=35 // pred_region
          %220 = dma.done [#allocation6], 1024
        $region44: #{tpu_custom_call.1} parent=35 // pred_fallthru
          _
        // Predicated region
        $region45: #{tpu_custom_call.1} parent=35 // pred_check
          %p221 = pneg %p85
        $region46: #{tpu_custom_call.1} parent=35 // pred_check_branch
          %223 = sbr.rel (%p221) target = $region48
        $region47: #{tpu_custom_call.1} parent=35 // pred_region
          %224 = dma.done [#allocation6], 1024
        $region48: #{tpu_custom_call.1} parent=35 // pred_fallthru
          _
        %s225 = sand.u32 %s30, 1
        %s226 = scalar_lea.sflag [#allocation3], %s225
        %s227 = sand.u32 %s30, 1
        %s228 = smul.addr %s227, 32
        %s229 = scalar_lea.vmem [#allocation2], %s228
        %p230 = pneg %p43
        %p231 = pneg %p40
        %p232 = pneg %p64
        %p233 = pneg %p61
        %p234 = pneg %p85
        %p235 = pneg %p82
        %p236 = pneg %p106
        %p237 = pneg %p103
        %p238 = pneg %p132
        %p239 = pneg %p129
        %s240 = sand.u32 %s119, 1
        %s241 = scalar_lea.sflag [#allocation4], %s240
        %s242 = sand.u32 %s119, 1
        %s243 = smul.addr %s242, 32
        %s244 = scalar_lea.vmem [#allocation8], %s243
        %s245 = smul.u32 4, %s22
        %s246 = smul.u32 4, %s22
        %v248 = vld [vmem:[%s212] sm:$0xff]
        %v249 = vld [vmem:[%s212 + $0x8] sm:$0xff]
        %v250 = vld [vmem:[%s212 + $0x10] sm:$0xff]
        %v251 = vld [vmem:[%s212 + $0x18] sm:$0xff]
        %v252 = vpack.c.bf16 %v249, %v248
        %v253 = vpack.c.bf16 %v251, %v250
        %v254 = vld [vmem:[#allocation5] sm:$0xf]
        %v255 = vld [vmem:[#allocation5 + $0x4] sm:$0xf]
        %v256 = vld [vmem:[#allocation5 + $0x8] sm:$0xf]
        %v257 = vld [vmem:[#allocation5 + $0xc] sm:$0xf]
        %v258 = vld [vmem:[#allocation5 + $0x10] sm:$0xf]
        %v259 = vld [vmem:[#allocation5 + $0x14] sm:$0xf]
        %v260 = vld [vmem:[#allocation5 + $0x18] sm:$0xf]
        %v261 = vld [vmem:[#allocation5 + $0x1c] sm:$0xf]
        %v262 = vld [vmem:[#allocation5 + $0x20] sm:$0xf]
        %v263 = vld [vmem:[#allocation5 + $0x24] sm:$0xf]
        %v264 = vld [vmem:[#allocation5 + $0x28] sm:$0xf]
        %v265 = vld [vmem:[#allocation5 + $0x2c] sm:$0xf]
        %v266 = vld [vmem:[#allocation5 + $0x30] sm:$0xf]
        %v267 = vld [vmem:[#allocation5 + $0x34] sm:$0xf]
        %v268 = vld [vmem:[#allocation5 + $0x38] sm:$0xf]
        %v269 = vld [vmem:[#allocation5 + $0x3c] sm:$0xf]
        %v270 = vld [vmem:[%s3] sm:$0x1]
        %v271 = vlaneseq
        %v272 = vshrl.u32 %v271, 7
        %v273 = vsub.s32 0, %v272
        %v274 = vrot.slane %v270, %v273
        %v291 = vunpack.c.l.b16 %v254
        %v292 = vunpack.c.l.b16 %v255
        %v293 = vunpack.c.l.b16 %v256
        %v294 = vunpack.c.l.b16 %v257
        %v295 = vunpack.c.l.b16 %v258
        %v296 = vunpack.c.l.b16 %v259
        %v297 = vunpack.c.l.b16 %v260
        %v298 = vunpack.c.l.b16 %v261
        %v299 = vunpack.c.l.b16 %v262
        %v300 = vunpack.c.l.b16 %v263
        %v301 = vunpack.c.l.b16 %v264
        %v302 = vunpack.c.l.b16 %v265
        %v303 = vunpack.c.l.b16 %v266
        %v304 = vunpack.c.l.b16 %v267
        %v305 = vunpack.c.l.b16 %v268
        %v306 = vunpack.c.l.b16 %v269
        %v307 = vpack.c.b16 %v292, %v291
        %v308 = vpack.c.b16 %v294, %v293
        %v309 = vpack.c.b16 %v296, %v295
        %v310 = vpack.c.b16 %v298, %v297
        %v311 = vpack.c.b16 %v300, %v299
        %v312 = vpack.c.b16 %v302, %v301
        %v313 = vpack.c.b16 %v304, %v303
        %v314 = vpack.c.b16 %v306, %v305
        %323 = vmatprep.subr.bf16.mxu0 0
        %324 = vmatpush1.bf16.msra.mxu0 %v307
        %325 = vmatprep.subr.bf16.mxu0 0
        %326 = vmatpush1.bf16.msra.mxu0 %v308
        %327 = vmatprep.subr.bf16.mxu0 0
        %328 = vmatpush1.bf16.msra.mxu0 %v309
        %329 = vmatprep.subr.bf16.mxu0 0
        %330 = vmatpush1.bf16.msra.mxu0 %v310
        %331 = vmatprep.subr.bf16.mxu0 0
        %332 = vmatpush1.bf16.msra.mxu0 %v311
        %333 = vmatprep.subr.bf16.mxu0 0
        %334 = vmatpush1.bf16.msra.mxu0 %v312
        %335 = vmatprep.subr.bf16.mxu0 0
        %336 = vmatpush1.bf16.msra.mxu0 %v313
        %337 = vmatprep.subr.bf16.mxu0 0
        %338 = vmatpush1.bf16.msra.mxu0 %v314
        %339 = vmatprep.subr.bf16.mxu0 0
        %340 = vmatpush1.bf16.msra.mxu0 0
        %341 = vmatprep.subr.bf16.mxu0 0
        %342 = vmatpush1.bf16.msra.mxu0 0
        %343 = vmatprep.subr.bf16.mxu0 0
        %344 = vmatpush1.bf16.msra.mxu0 0
        %345 = vmatprep.subr.bf16.mxu0 0
        %346 = vmatpush1.bf16.msra.mxu0 0
        %347 = vmatprep.subr.bf16.mxu0 0
        %348 = vmatpush1.bf16.msra.mxu0 0
        %349 = vmatprep.subr.bf16.mxu0 0
        %350 = vmatpush1.bf16.msra.mxu0 0
        %351 = vmatprep.subr.bf16.mxu0 0
        %352 = vmatpush1.bf16.msra.mxu0 0
        %353 = vmatprep.subr.bf16.mxu0 0
        %354 = vmatpush1.bf16.msra.mxu0 0
        %355 = vmatprep.mubr.bf16.mxu0 0
        %356 = vmatmul.mubr.bf16.gmra.mrb[0].mxu0 %v252
        %v357 = vpop.f32.mrb[0].mxu0
        %v358 = vadd.f32 %v274, %v357
        %v359 = vpop.f32.mrb[0].mxu0
        %v360 = vpop.f32.mrb[0].mxu0
        %v361 = vadd.f32 %v274, %v360
        %v362 = vpop.f32.mrb[0].mxu0
        %363 = vmatprep.mubr.bf16.mxu0 0
        %364 = vmatmul.mubr.bf16.gmra.mrb[0].mxu0 %v253
        %v365 = vpop.f32.mrb[0].mxu0
        %v366 = vadd.f32 %v274, %v365
        %v367 = vpop.f32.mrb[0].mxu0
        %v368 = vpop.f32.mrb[0].mxu0
        %v369 = vadd.f32 %v274, %v368
        %v370 = vpop.f32.mrb[0].mxu0
        %371 = vdwg.mxu0
        %v372 = vmax.f32 %v358, 0.0
        %v373 = vmax.f32 %v361, 0.0
        %v374 = vmax.f32 %v366, 0.0
        %v375 = vmax.f32 %v369, 0.0
        %v376 = vpack.c.bf16 %v373, %v372
        %v377 = vpack.c.bf16 %v375, %v374
        %v378 = vld [vmem:[#allocation7] sm:$0xf]
        %v379 = vld [vmem:[#allocation7 + $0x4] sm:$0xf]
        %v380 = vld [vmem:[#allocation7 + $0x8] sm:$0xf]
        %v381 = vld [vmem:[#allocation7 + $0xc] sm:$0xf]
        %v382 = vld [vmem:[#allocation7 + $0x10] sm:$0xf]
        %v383 = vld [vmem:[#allocation7 + $0x14] sm:$0xf]
        %v384 = vld [vmem:[#allocation7 + $0x18] sm:$0xf]
        %v385 = vld [vmem:[#allocation7 + $0x1c] sm:$0xf]
        %v386 = vld [vmem:[#allocation7 + $0x20] sm:$0xf]
        %v387 = vld [vmem:[#allocation7 + $0x24] sm:$0xf]
        %v388 = vld [vmem:[#allocation7 + $0x28] sm:$0xf]
        %v389 = vld [vmem:[#allocation7 + $0x2c] sm:$0xf]
        %v390 = vld [vmem:[#allocation7 + $0x30] sm:$0xf]
        %v391 = vld [vmem:[#allocation7 + $0x34] sm:$0xf]
        %v392 = vld [vmem:[#allocation7 + $0x38] sm:$0xf]
        %v393 = vld [vmem:[#allocation7 + $0x3c] sm:$0xf]
        %v394 = vld [vmem:[%s3 + $0x1] sm:$0x1]
        %v395 = vlaneseq
        %v396 = vshrl.u32 %v395, 7
        %v397 = vsub.s32 0, %v396
        %v398 = vrot.slane %v394, %v397
        %v415 = vunpack.c.l.b16 %v378
        %v416 = vunpack.c.l.b16 %v379
        %v417 = vunpack.c.l.b16 %v380
        %v418 = vunpack.c.l.b16 %v381
        %v419 = vunpack.c.l.b16 %v382
        %v420 = vunpack.c.l.b16 %v383
        %v421 = vunpack.c.l.b16 %v384
        %v422 = vunpack.c.l.b16 %v385
        %v423 = vunpack.c.l.b16 %v386
        %v424 = vunpack.c.l.b16 %v387
        %v425 = vunpack.c.l.b16 %v388
        %v426 = vunpack.c.l.b16 %v389
        %v427 = vunpack.c.l.b16 %v390
        %v428 = vunpack.c.l.b16 %v391
        %v429 = vunpack.c.l.b16 %v392
        %v430 = vunpack.c.l.b16 %v393
        %v431 = vpack.c.b16 %v416, %v415
        %v432 = vpack.c.b16 %v418, %v417
        %v433 = vpack.c.b16 %v420, %v419
        %v434 = vpack.c.b16 %v422, %v421
        %v435 = vpack.c.b16 %v424, %v423
        %v436 = vpack.c.b16 %v426, %v425
        %v437 = vpack.c.b16 %v428, %v427
        %v438 = vpack.c.b16 %v430, %v429
        %447 = vmatprep.subr.bf16.mxu0 0
        %448 = vmatpush1.bf16.msra.mxu0 %v431
        %449 = vmatprep.subr.bf16.mxu0 0
        %450 = vmatpush1.bf16.msra.mxu0 %v432
        %451 = vmatprep.subr.bf16.mxu0 0
        %452 = vmatpush1.bf16.msra.mxu0 %v433
        %453 = vmatprep.subr.bf16.mxu0 0
        %454 = vmatpush1.bf16.msra.mxu0 %v434
        %455 = vmatprep.subr.bf16.mxu0 0
        %456 = vmatpush1.bf16.msra.mxu0 %v435
        %457 = vmatprep.subr.bf16.mxu0 0
        %458 = vmatpush1.bf16.msra.mxu0 %v436
        %459 = vmatprep.subr.bf16.mxu0 0
        %460 = vmatpush1.bf16.msra.mxu0 %v437
        %461 = vmatprep.subr.bf16.mxu0 0
        %462 = vmatpush1.bf16.msra.mxu0 %v438
        %463 = vmatprep.subr.bf16.mxu0 0
        %464 = vmatpush1.bf16.msra.mxu0 0
        %465 = vmatprep.subr.bf16.mxu0 0
        %466 = vmatpush1.bf16.msra.mxu0 0
        %467 = vmatprep.subr.bf16.mxu0 0
        %468 = vmatpush1.bf16.msra.mxu0 0
        %469 = vmatprep.subr.bf16.mxu0 0
        %470 = vmatpush1.bf16.msra.mxu0 0
        %471 = vmatprep.subr.bf16.mxu0 0
        %472 = vmatpush1.bf16.msra.mxu0 0
        %473 = vmatprep.subr.bf16.mxu0 0
        %474 = vmatpush1.bf16.msra.mxu0 0
        %475 = vmatprep.subr.bf16.mxu0 0
        %476 = vmatpush1.bf16.msra.mxu0 0
        %477 = vmatprep.subr.bf16.mxu0 0
        %478 = vmatpush1.bf16.msra.mxu0 0
        %479 = vmatprep.mubr.bf16.mxu0 0
        %480 = vmatmul.mubr.bf16.gmra.mrb[0].mxu0 %v376
        %v481 = vpop.f32.mrb[0].mxu0
        %v482 = vadd.f32 %v398, %v481
        %v483 = vpop.f32.mrb[0].mxu0
        %v484 = vpop.f32.mrb[0].mxu0
        %v485 = vadd.f32 %v398, %v484
        %v486 = vpop.f32.mrb[0].mxu0
        %487 = vmatprep.mubr.bf16.mxu0 0
        %488 = vmatmul.mubr.bf16.gmra.mrb[0].mxu0 %v377
        %v489 = vpop.f32.mrb[0].mxu0
        %v490 = vadd.f32 %v398, %v489
        %v491 = vpop.f32.mrb[0].mxu0
        %v492 = vpop.f32.mrb[0].mxu0
        %v493 = vadd.f32 %v398, %v492
        %v494 = vpop.f32.mrb[0].mxu0
        %495 = vdwg.mxu0
        %v496 = vadd.f32 %v482, %v248
        %v497 = vadd.f32 %v485, %v249
        %v498 = vadd.f32 %v490, %v250
        %v499 = vadd.f32 %v493, %v251
        %500 = vadd.xlane.f32.xlu0 %v496
        %v501 = vpop.xlane.xlu0 %500
        %502 = vadd.xlane.f32.xlu0 %v497
        %v503 = vpop.xlane.xlu0 %502
        %504 = vadd.xlane.f32.xlu0 %v498
        %v505 = vpop.xlane.xlu0 %504
        %506 = vadd.xlane.f32.xlu0 %v499
        %v507 = vpop.xlane.xlu0 %506
        %v508 = vrcp.pop 128.0
        %v509 = vmul.f32 %v501, %v508
        %v510 = vmul.f32 %v503, %v508
        %v511 = vmul.f32 %v505, %v508
        %v512 = vmul.f32 %v507, %v508
        %v513 = vsub.f32 %v496, %v509
        %v514 = vsub.f32 %v497, %v510
        %v515 = vsub.f32 %v498, %v511
        %v516 = vsub.f32 %v499, %v512
        %v517 = vmul.f32 %v513, %v513
        %v518 = vmul.f32 %v514, %v514
        %v519 = vmul.f32 %v515, %v515
        %v520 = vmul.f32 %v516, %v516
        %521 = vadd.xlane.f32.xlu0 %v517
        %v522 = vpop.xlane.xlu0 %521
        %523 = vadd.xlane.f32.xlu0 %v518
        %v524 = vpop.xlane.xlu0 %523
        %525 = vadd.xlane.f32.xlu0 %v519
        %v526 = vpop.xlane.xlu0 %525
        %527 = vadd.xlane.f32.xlu0 %v520
        %v528 = vpop.xlane.xlu0 %527
        %v529 = vmul.f32 %v522, %v508
        %v530 = vmul.f32 %v524, %v508
        %v531 = vmul.f32 %v526, %v508
        %v532 = vmul.f32 %v528, %v508
        %v533 = vadd.f32 %v529, 1e-05
        %v534 = vadd.f32 %v530, 1e-05
        %v535 = vadd.f32 %v531, 1e-05
        %v536 = vadd.f32 %v532, 1e-05
        %v537 = vrsqrt.pop %v533
        %v538 = vrsqrt.pop %v534
        %v539 = vrsqrt.pop %v535
        %v540 = vrsqrt.pop %v536
        %v541 = vmul.f32 %v513, %v537
        %v542 = vmul.f32 %v514, %v538
        %v543 = vmul.f32 %v515, %v539
        %v544 = vmul.f32 %v516, %v540
        %v545 = vld [vmem:[%s3 + $0x2] sm:$0x1]
        %v546 = vlaneseq
        %v547 = vshrl.u32 %v546, 7
        %v548 = vsub.s32 0, %v547
        %v549 = vrot.slane %v545, %v548
        %v550 = vmul.f32 %v541, %v549
        %v551 = vmul.f32 %v542, %v549
        %v552 = vmul.f32 %v543, %v549
        %v553 = vmul.f32 %v544, %v549
        %v554 = vld [vmem:[%s3 + $0x3] sm:$0x1]
        %v555 = vlaneseq
        %v556 = vshrl.u32 %v555, 7
        %v557 = vsub.s32 0, %v556
        %v558 = vrot.slane %v554, %v557
        %v559 = vadd.f32 %v550, %v558
        %v560 = vadd.f32 %v551, %v558
        %v561 = vadd.f32 %v552, %v558
        %v562 = vadd.f32 %v553, %v558
        %v563 = vmax.f32 %v559, 0.0
        %v564 = vmax.f32 %v560, 0.0
        %v565 = vmax.f32 %v561, 0.0
        %v566 = vmax.f32 %v562, 0.0
        %567 = vst [vmem:[%s244] sm:$0xff] %v563
        %568 = vst [vmem:[%s244 + $0x8] sm:$0xff] %v564
        %569 = vst [vmem:[%s244 + $0x10] sm:$0xff] %v565
        %570 = vst [vmem:[%s244 + $0x18] sm:$0xff] %v566
        %s571 = sand.u32 %s119, 1
        %s572 = scalar_lea.sflag [#allocation4], %s571
        %s573 = sand.u32 %s119, 1
        %s574 = smul.addr %s573, 32
        %s575 = scalar_lea.vmem [#allocation8], %s574
        // Predicated region
        $region49: #{tpu_custom_call.1} parent=35 // pred_check
          %p576 = pneg %p129
        $region50: #{tpu_custom_call.1} parent=35 // pred_check_branch
          %578 = sbr.rel (%p576) target = $region52
        $region51: #{tpu_custom_call.1} parent=35 // pred_region
          %s579 = smul.u32 4, %s22
          %s581 = ssub.s32 512, 512
          %582 = vsyncadd %s572, %s581
          %s583 = smul.addr %s579, 128
          %s584 = scalar_lea.hbm %s4, %s583
          %s585 = sshll.u32 %s575, 4
          %s586 = int_to_ptr.vmem [resolvable:$true] %s585
          %591 = dma.vmem_to_hbm [thread:$0]  %s586, 512, %s584, %s572, 128, 128, 8
        $region52: #{tpu_custom_call.1} parent=35 // pred_fallthru
          _
      $region36: #{tpu_custom_call.1} parent=5 // pred_fallthru
        _
      %p592 = scmp.le.s32.totalorder 2, %s17
      // Predicated region
      $region53: #{tpu_custom_call.1} parent=5 // pred_check
        %p593 = pneg %p592
      $region54: #{tpu_custom_call.1} parent=5 // pred_check_branch
        %595 = sbr.rel (%p593) target = $region56
      $region55: #{tpu_custom_call.1} parent=5 // pred_region
        %s596 = ssub.s32 %s17, 2
        // Predicated region
        $region57: #{tpu_custom_call.1} parent=55 // pred_check
          %p597 = pneg %p135
        $region58: #{tpu_custom_call.1} parent=55 // pred_check_branch
          %599 = sbr.rel (%p597) target = $region60
        $region59: #{tpu_custom_call.1} parent=55 // pred_region
          %s600 = sand.u32 %s120, 1
          %s601 = scalar_lea.sflag [#allocation4], %s600
          %s602 = sand.u32 %s120, 1
          %s603 = smul.addr %s602, 32
          %s604 = scalar_lea.vmem [#allocation8], %s603
          %605 = dma.done %s601, 512
        $region60: #{tpu_custom_call.1} parent=55 // pred_fallthru
          _
      $region56: #{tpu_custom_call.1} parent=5 // pred_fallthru
        _
    $region6: #{tpu_custom_call.1} parent=1 // loop_footer
      %s21 = sadd.s32 1, %s17
    $region7: #{tpu_custom_call.1} parent=1 // loop_footer_branch
      %16 = sbr.rel target = $region3
    $region8: #{tpu_custom_call.1} parent=1 // loop_exit
      _
    %606 = vsyncpa [#allocation3], 1
    %s607 = scalar_lea.sflag [#allocation3], 1
    %608 = vsyncpa %s607, 1
    %609 = vsyncpa [#allocation6], 1
    %610 = vsyncpa [#allocation4], 1
    %s611 = scalar_lea.sflag [#allocation4], 1
    %612 = vsyncpa %s611, 1

// kernel: tpu_custom_call.1
$region0: #{tpu_custom_call.1}
  #allocation0 [shape = 'u32[]', space=smem, size = 0x4, offset = 0x4, fixed_abs, tag = 'smem constant byte address 0x4 - core index']
  #allocation1 [shape = 'u32[144,128]{1,0:T(1,128)}', space=vmem, size = 0x12000, scoped, tag = 'internal scratch']
  %s0 = inlined_call_operand.hbm [shape: f32[64,128], index: 0, kind: input, shape index: {}]
  %s1 = inlined_call_operand.hbm [shape: bf16[128,128], index: 1, kind: input, shape index: {}]
  %s2 = inlined_call_operand.hbm [shape: bf16[128,128], index: 2, kind: input, shape index: {}]
  %s3 = inlined_call_operand.vmem [shape: f32[4,128], index: 3, kind: input, shape index: {}]
  %s4 = inlined_call_operand.hbm [shape: f32[64,128], index: 4, kind: output, shape index: {}]
  %s5 = sld [smem:[#allocation0]]
  $region61: #{tpu_custom_call.1} parent=0
    _
  %s7 = ssub.s32 1, %s5
  %s8 = scalar_select 0, %s7, %s5
  $region1: #{tpu_custom_call.1} parent=0
    #allocation2 [shape = 'u8[32768]{0}', space=vmem, size = 0x8000, scoped, tag = 'input window, operand 0']
    #allocation3 [shape = 's32[2]{0}', space=sflag, size = 0x8, scoped, tag = 'scoped memory for tpu_custom_call.1']
    #allocation4 [shape = 's32[2]{0}', space=sflag, size = 0x8, scoped, tag = 'scoped memory for tpu_custom_call.1']
    #allocation5 [shape = 'u8[32768]{0}', space=vmem, size = 0x8000, scoped, tag = 'input window, operand 1, single buffered']
    #allocation6 [shape = 's32[1]{0}', space=sflag, size = 0x4, scoped, tag = 'scoped memory for tpu_custom_call.1']
    #allocation7 [shape = 'u8[32768]{0}', space=vmem, size = 0x8000, scoped, tag = 'input window, operand 2, single buffered']
    #allocation8 [shape = 'u8[32768]{0}', space=vmem, size = 0x8000, scoped, tag = 'output window, operand 0']
    %9 = vsyncpa [#allocation3], 0
    %s10 = scalar_lea.sflag [#allocation3], 1
    %11 = vsyncpa %s10, 0
    %12 = vsyncpa [#allocation6], 0
    %13 = vsyncpa [#allocation4], 0
    %s14 = scalar_lea.sflag [#allocation4], 1
    %15 = vsyncpa %s14, 0
    loop: start=0, step=1, limit=4
    $region2: #{tpu_custom_call.1} parent=1 // loop_pre_header
      _
    $region3: #{tpu_custom_call.1} parent=1 // loop_header
      %s17 = sphi 0, %s21
      %p18 = scmp.ge.s32.totalorder %s17, 4
      %s27 = sphi 0, %s29
      %s30 = sphi 0, %s27
      %s31 = sphi 0, %s30
      %s47 = sphi 0, %s31
      %s51 = sphi 0, %s51
      %s53 = sphi 0, %s51
      %s54 = sphi 0, %s53
      %s68 = sphi 0, %s54
      %s72 = sphi 0, %s72
      %s74 = sphi 0, %s72
      %s75 = sphi 0, %s74
      %s89 = sphi 0, %s75
      %s93 = sphi 0, %s93
      %s95 = sphi 0, %s93
      %s96 = sphi 0, %s95
      %s110 = sphi 0, %s96
      %s116 = sphi 0, %s118
      %s119 = sphi 0, %s116
      %s120 = sphi 0, %s119
      %s136 = sphi 0, %s120
    $region4: #{tpu_custom_call.1} parent=1 // loop_header_branch
      %20 = sbr.rel (%p18) target = $region8
    $region5: #{tpu_custom_call.1} parent=1 // loop_body
      %s22 = ssub.s32 %s17, 1
      %s23 = ssub.s32 %s17, 2
      %s24 = sadd.s32 %s17, 1
      %s25 = ssub.s32 %s17, %s24
      %p26 = scmp.eq.s32.totalorder %s25, 0
      %s28 = sadd.s32 %s27, 1
      %s29 = scalar_select %p26, %s27, %s28
      %p32 = pneg %p26
      %p33 = scmp.eq.s32.totalorder %s17, 1
      %p34 = por %p32, %p33
      %p35 = scmp.ne.s32.totalorder %s27, %s30
      %p36 = scmp.eq.s32.totalorder %s17, 0
      %p37 = por %p35, %p36
      %p38 = scmp.ne.s32.totalorder %s27, %s30
      %p39 = scmp.eq.s32.totalorder %s22, 1
      %p40 = por %p38, %p39
      %p41 = scmp.ne.s32.totalorder %s30, %s31
      %p42 = scmp.eq.s32.totalorder %s22, 0
      %p43 = por %p41, %p42
      %p44 = scmp.ne.s32.totalorder %s30, %s31
      %p45 = scmp.eq.s32.totalorder %s23, 1
      %p46 = por %p44, %p45
      %p48 = scmp.ne.s32.totalorder %s31, %s47
      %p49 = scmp.eq.s32.totalorder %s23, 0
      %p50 = por %p48, %p49
      %s52 = sadd.s32 %s51, 1
      %p55 = scmp.eq.s32.totalorder %s17, 1
      %p56 = scmp.ne.s32.totalorder %s51, %s53
      %p57 = scmp.eq.s32.totalorder %s17, 0
      %p58 = por %p56, %p57
      %p59 = scmp.ne.s32.totalorder %s51, %s53
      %p60 = scmp.eq.s32.totalorder %s22, 1
      %p61 = por %p59, %p60
      %p62 = scmp.ne.s32.totalorder %s53, %s54
      %p63 = scmp.eq.s32.totalorder %s22, 0
      %p64 = por %p62, %p63
      %p65 = scmp.ne.s32.totalorder %s53, %s54
      %p66 = scmp.eq.s32.totalorder %s23, 1
      %p67 = por %p65, %p66
      %p69 = scmp.ne.s32.totalorder %s54, %s68
      %p70 = scmp.eq.s32.totalorder %s23, 0
      %p71 = por %p69, %p70
      %s73 = sadd.s32 %s72, 1
      %p76 = scmp.eq.s32.totalorder %s17, 1
      %p77 = scmp.ne.s32.totalorder %s72, %s74
      %p78 = scmp.eq.s32.totalorder %s17, 0
      %p79 = por %p77, %p78
      %p80 = scmp.ne.s32.totalorder %s72, %s74
      %p81 = scmp.eq.s32.totalorder %s22, 1
      %p82 = por %p80, %p81
      %p83 = scmp.ne.s32.totalorder %s74, %s75
      %p84 = scmp.eq.s32.totalorder %s22, 0
      %p85 = por %p83, %p84
      %p86 = scmp.ne.s32.totalorder %s74, %s75
      %p87 = scmp.eq.s32.totalorder %s23, 1
      %p88 = por %p86, %p87
      %p90 = scmp.ne.s32.totalorder %s75, %s89
      %p91 = scmp.eq.s32.totalorder %s23, 0
      %p92 = por %p90, %p91
      %s94 = sadd.s32 %s93, 1
      %p97 = scmp.eq.s32.totalorder %s17, 1
      %p98 = scmp.ne.s32.totalorder %s93, %s95
      %p99 = scmp.eq.s32.totalorder %s17, 0
      %p100 = por %p98, %p99
      %p101 = scmp.ne.s32.totalorder %s93, %s95
      %p102 = scmp.eq.s32.totalorder %s22, 1
      %p103 = por %p101, %p102
      %p104 = scmp.ne.s32.totalorder %s95, %s96
      %p105 = scmp.eq.s32.totalorder %s22, 0
      %p106 = por %p104, %p105
      %p107 = scmp.ne.s32.totalorder %s95, %s96
      %p108 = scmp.eq.s32.totalorder %s23, 1
      %p109 = por %p107, %p108
      %p111 = scmp.ne.s32.totalorder %s96, %s110
      %p112 = scmp.eq.s32.totalorder %s23, 0
      %p113 = por %p111, %p112
      %s114 = ssub.s32 %s17, %s24
      %p115 = scmp.eq.s32.totalorder %s114, 0
      %s117 = sadd.s32 %s116, 1
      %s118 = scalar_select %p115, %s116, %s117
      %p121 = pneg %p115
      %p122 = scmp.eq.s32.totalorder %s17, 1
      %p123 = por %p121, %p122
      %p124 = scmp.ne.s32.totalorder %s116, %s119
      %p125 = scmp.eq.s32.totalorder %s17, 0
      %p126 = por %p124, %p125
      %p127 = scmp.ne.s32.totalorder %s116, %s119
      %p128 = scmp.eq.s32.totalorder %s22, 1
      %p129 = por %p127, %p128
      %p130 = scmp.ne.s32.totalorder %s119, %s120
      %p131 = scmp.eq.s32.totalorder %s22, 0
      %p132 = por %p130, %p131
      %p133 = scmp.ne.s32.totalorder %s119, %s120
      %p134 = scmp.eq.s32.totalorder %s23, 1
      %p135 = por %p133, %p134
      %p137 = scmp.ne.s32.totalorder %s120, %s136
      %p138 = scmp.eq.s32.totalorder %s23, 0
      %p139 = por %p137, %p138
      %p140 = scmp.le.s32.totalorder 1, %s17
      %p141 = scmp.lt.s32.totalorder %s17, 3
      %p142 = pnand %p140, %p141
      %p143 = pneg %p142
      // Predicated region
      $region9: #{tpu_custom_call.1} parent=5 // pred_check
        _
      $region10: #{tpu_custom_call.1} parent=5 // pred_check_branch
        %145 = sbr.rel (%p142) target = $region12
      $region11: #{tpu_custom_call.1} parent=5 // pred_region
        %s146 = ssub.s32 %s17, 1
        // Predicated region
        $region13: #{tpu_custom_call.1} parent=11 // pred_check
          %p147 = pneg %p64
        $region14: #{tpu_custom_call.1} parent=11 // pred_check_branch
          %149 = sbr.rel (%p147) target = $region16
        $region15: #{tpu_custom_call.1} parent=11 // pred_region
          %s151 = ssub.s32 1024, 1024
          %152 = vsyncadd [#allocation6], %s151
          %s153 = sshll.u32 [#allocation5], 4
          %s154 = int_to_ptr.vmem [resolvable:$true] %s153
          %159 = dma.hbm_to_vmem [thread:$0]  %s1, 1024, %s154, [#allocation6], 64, 64, 4
        $region16: #{tpu_custom_call.1} parent=11 // pred_fallthru
          _
        // Predicated region
        $region17: #{tpu_custom_call.1} parent=11 // pred_check
          %p160 = pneg %p85
        $region18: #{tpu_custom_call.1} parent=11 // pred_check_branch
          %162 = sbr.rel (%p160) target = $region20
        $region19: #{tpu_custom_call.1} parent=11 // pred_region
          %s164 = ssub.s32 1024, 1024
          %165 = vsyncadd [#allocation6], %s164
          %s166 = sshll.u32 [#allocation7], 4
          %s167 = int_to_ptr.vmem [resolvable:$true] %s166
          %172 = dma.hbm_to_vmem [thread:$0]  %s2, 1024, %s167, [#allocation6], 64, 64, 4
        $region20: #{tpu_custom_call.1} parent=11 // pred_fallthru
          _
        // Predicated region
        $region21: #{tpu_custom_call.1} parent=11 // pred_check
          %p173 = pneg %p106
        $region22: #{tpu_custom_call.1} parent=11 // pred_check_branch
          %175 = sbr.rel (%p173) target = $region24
        $region23: #{tpu_custom_call.1} parent=11 // pred_region
          _
        $region24: #{tpu_custom_call.1} parent=11 // pred_fallthru
          _
      $region12: #{tpu_custom_call.1} parent=5 // pred_fallthru
        _
      %p176 = scmp.lt.s32.totalorder %s17, 2
      // Predicated region
      $region25: #{tpu_custom_call.1} parent=5 // pred_check
        %p177 = pneg %p176
      $region26: #{tpu_custom_call.1} parent=5 // pred_check_branch
        %179 = sbr.rel (%p177) target = $region28
      $region27: #{tpu_custom_call.1} parent=5 // pred_region
        // Predicated region
        $region29: #{tpu_custom_call.1} parent=27 // pred_check
          %p180 = pneg %p37
        $region30: #{tpu_custom_call.1} parent=27 // pred_check_branch
          %182 = sbr.rel (%p180) target = $region32
        $region31: #{tpu_custom_call.1} parent=27 // pred_region
          %s183 = sand.u32 %s27, 1
          %s184 = scalar_lea.sflag [#allocation3], %s183
          %s185 = sand.u32 %s27, 1
          %s186 = smul.addr %s185, 32
          %s187 = scalar_lea.vmem [#allocation2], %s186
          %s188 = smul.u32 4, %s17
          %s190 = ssub.s32 512, 512
          %191 = vsyncadd %s184, %s190
          %s192 = smul.addr %s188, 128
          %s193 = scalar_lea.hbm %s0, %s192
          %s194 = sshll.u32 %s187, 4
          %s195 = int_to_ptr.vmem [resolvable:$true] %s194
          %200 = dma.hbm_to_vmem [thread:$0]  %s193, 512, %s195, %s184, 128, 128, 8
        $region32: #{tpu_custom_call.1} parent=27 // pred_fallthru
          _
      $region28: #{tpu_custom_call.1} parent=5 // pred_fallthru
        _
      %p201 = scmp.le.s32.totalorder 1, %s17
      %p202 = scmp.lt.s32.totalorder %s17, 3
      %p203 = pnand %p201, %p202
      %p204 = pneg %p203
      // Predicated region
      $region33: #{tpu_custom_call.1} parent=5 // pred_check
        _
      $region34: #{tpu_custom_call.1} parent=5 // pred_check_branch
        %206 = sbr.rel (%p203) target = $region36
      $region35: #{tpu_custom_call.1} parent=5 // pred_region
        %s207 = ssub.s32 %s17, 1
        %s208 = sand.u32 %s30, 1
        %s209 = scalar_lea.sflag [#allocation3], %s208
        %s210 = sand.u32 %s30, 1
        %s211 = smul.addr %s210, 32
        %s212 = scalar_lea.vmem [#allocation2], %s211
        // Predicated region
        $region37: #{tpu_custom_call.1} parent=35 // pred_check
          %p213 = pneg %p43
        $region38: #{tpu_custom_call.1} parent=35 // pred_check_branch
          %215 = sbr.rel (%p213) target = $region40
        $region39: #{tpu_custom_call.1} parent=35 // pred_region
          %216 = dma.done %s209, 512
        $region40: #{tpu_custom_call.1} parent=35 // pred_fallthru
          _
        // Predicated region
        $region41: #{tpu_custom_call.1} parent=35 // pred_check
          %p217 = pneg %p64
        $region42: #{tpu_custom_call.1} parent=35 // pred_check_branch
          %219 = sbr.rel (%p217) target = $region44
        $region43: #{tpu_custom_call.1} parent=35 // pred_region
          %220 = dma.done [#allocation6], 1024
        $region44: #{tpu_custom_call.1} parent=35 // pred_fallthru
          _
        // Predicated region
        $region45: #{tpu_custom_call.1} parent=35 // pred_check
          %p221 = pneg %p85
        $region46: #{tpu_custom_call.1} parent=35 // pred_check_branch
          %223 = sbr.rel (%p221) target = $region48
        $region47: #{tpu_custom_call.1} parent=35 // pred_region
          %224 = dma.done [#allocation6], 1024
        $region48: #{tpu_custom_call.1} parent=35 // pred_fallthru
          _
        %s225 = sand.u32 %s30, 1
        %s226 = scalar_lea.sflag [#allocation3], %s225
        %s227 = sand.u32 %s30, 1
        %s228 = smul.addr %s227, 32
        %s229 = scalar_lea.vmem [#allocation2], %s228
        %p230 = pneg %p43
        %p231 = pneg %p40
        %p232 = pneg %p64
        %p233 = pneg %p61
        %p234 = pneg %p85
        %p235 = pneg %p82
        %p236 = pneg %p106
        %p237 = pneg %p103
        %p238 = pneg %p132
        %p239 = pneg %p129
        %s240 = sand.u32 %s119, 1
        %s241 = scalar_lea.sflag [#allocation4], %s240
        %s242 = sand.u32 %s119, 1
        %s243 = smul.addr %s242, 32
        %s244 = scalar_lea.vmem [#allocation8], %s243
        %s245 = smul.u32 4, %s22
        %s246 = smul.u32 4, %s22
        %v248 = vld [vmem:[%s212] sm:$0xff]
        %v249 = vld [vmem:[%s212 + $0x8] sm:$0xff]
        %v250 = vld [vmem:[%s212 + $0x10] sm:$0xff]
        %v251 = vld [vmem:[%s212 + $0x18] sm:$0xff]
        %v252 = vpack.c.bf16 %v249, %v248
        %v253 = vpack.c.bf16 %v251, %v250
        %v254 = vld [vmem:[#allocation5] sm:$0xf]
        %v255 = vld [vmem:[#allocation5 + $0x4] sm:$0xf]
        %v256 = vld [vmem:[#allocation5 + $0x8] sm:$0xf]
        %v257 = vld [vmem:[#allocation5 + $0xc] sm:$0xf]
        %v258 = vld [vmem:[#allocation5 + $0x10] sm:$0xf]
        %v259 = vld [vmem:[#allocation5 + $0x14] sm:$0xf]
        %v260 = vld [vmem:[#allocation5 + $0x18] sm:$0xf]
        %v261 = vld [vmem:[#allocation5 + $0x1c] sm:$0xf]
        %v262 = vld [vmem:[#allocation5 + $0x20] sm:$0xf]
        %v263 = vld [vmem:[#allocation5 + $0x24] sm:$0xf]
        %v264 = vld [vmem:[#allocation5 + $0x28] sm:$0xf]
        %v265 = vld [vmem:[#allocation5 + $0x2c] sm:$0xf]
        %v266 = vld [vmem:[#allocation5 + $0x30] sm:$0xf]
        %v267 = vld [vmem:[#allocation5 + $0x34] sm:$0xf]
        %v268 = vld [vmem:[#allocation5 + $0x38] sm:$0xf]
        %v269 = vld [vmem:[#allocation5 + $0x3c] sm:$0xf]
        %v270 = vld [vmem:[%s3] sm:$0x1]
        %v271 = vlaneseq
        %v272 = vshrl.u32 %v271, 7
        %v273 = vsub.s32 0, %v272
        %v274 = vrot.slane %v270, %v273
        %v291 = vunpack.c.l.b16 %v254
        %v292 = vunpack.c.l.b16 %v255
        %v293 = vunpack.c.l.b16 %v256
        %v294 = vunpack.c.l.b16 %v257
        %v295 = vunpack.c.l.b16 %v258
        %v296 = vunpack.c.l.b16 %v259
        %v297 = vunpack.c.l.b16 %v260
        %v298 = vunpack.c.l.b16 %v261
        %v299 = vunpack.c.l.b16 %v262
        %v300 = vunpack.c.l.b16 %v263
        %v301 = vunpack.c.l.b16 %v264
        %v302 = vunpack.c.l.b16 %v265
        %v303 = vunpack.c.l.b16 %v266
        %v304 = vunpack.c.l.b16 %v267
        %v305 = vunpack.c.l.b16 %v268
        %v306 = vunpack.c.l.b16 %v269
        %v307 = vpack.c.b16 %v292, %v291
        %v308 = vpack.c.b16 %v294, %v293
        %v309 = vpack.c.b16 %v296, %v295
        %v310 = vpack.c.b16 %v298, %v297
        %v311 = vpack.c.b16 %v300, %v299
        %v312 = vpack.c.b16 %v302, %v301
        %v313 = vpack.c.b16 %v304, %v303
        %v314 = vpack.c.b16 %v306, %v305
        %323 = vmatprep.subr.bf16.mxu0 0
        %324 = vmatpush1.bf16.msra.mxu0 %v307
        %325 = vmatprep.subr.bf16.mxu0 0
        %326 = vmatpush1.bf16.msra.mxu0 %v308
        %327 = vmatprep.subr.bf16.mxu0 0
        %328 = vmatpush1.bf16.msra.mxu0 %v309
        %329 = vmatprep.subr.bf16.mxu0 0
        %330 = vmatpush1.bf16.msra.mxu0 %v310
        %331 = vmatprep.subr.bf16.mxu0 0
        %332 = vmatpush1.bf16.msra.mxu0 %v311
        %333 = vmatprep.subr.bf16.mxu0 0
        %334 = vmatpush1.bf16.msra.mxu0 %v312
        %335 = vmatprep.subr.bf16.mxu0 0
        %336 = vmatpush1.bf16.msra.mxu0 %v313
        %337 = vmatprep.subr.bf16.mxu0 0
        %338 = vmatpush1.bf16.msra.mxu0 %v314
        %339 = vmatprep.subr.bf16.mxu0 0
        %340 = vmatpush1.bf16.msra.mxu0 0
        %341 = vmatprep.subr.bf16.mxu0 0
        %342 = vmatpush1.bf16.msra.mxu0 0
        %343 = vmatprep.subr.bf16.mxu0 0
        %344 = vmatpush1.bf16.msra.mxu0 0
        %345 = vmatprep.subr.bf16.mxu0 0
        %346 = vmatpush1.bf16.msra.mxu0 0
        %347 = vmatprep.subr.bf16.mxu0 0
        %348 = vmatpush1.bf16.msra.mxu0 0
        %349 = vmatprep.subr.bf16.mxu0 0
        %350 = vmatpush1.bf16.msra.mxu0 0
        %351 = vmatprep.subr.bf16.mxu0 0
        %352 = vmatpush1.bf16.msra.mxu0 0
        %353 = vmatprep.subr.bf16.mxu0 0
        %354 = vmatpush1.bf16.msra.mxu0 0
        %355 = vmatprep.mubr.bf16.mxu0 0
        %356 = vmatmul.mubr.bf16.gmra.mrb[0].mxu0 %v252
        %v357 = vpop.f32.mrb[0].mxu0
        %v358 = vadd.f32 %v274, %v357
        %v359 = vpop.f32.mrb[0].mxu0
        %v360 = vpop.f32.mrb[0].mxu0
        %v361 = vadd.f32 %v274, %v360
        %v362 = vpop.f32.mrb[0].mxu0
        %363 = vmatprep.mubr.bf16.mxu0 0
        %364 = vmatmul.mubr.bf16.gmra.mrb[0].mxu0 %v253
        %v365 = vpop.f32.mrb[0].mxu0
        %v366 = vadd.f32 %v274, %v365
        %v367 = vpop.f32.mrb[0].mxu0
        %v368 = vpop.f32.mrb[0].mxu0
        %v369 = vadd.f32 %v274, %v368
        %v370 = vpop.f32.mrb[0].mxu0
        %371 = vdwg.mxu0
        %v372 = vmax.f32 %v358, 0.0
        %v373 = vmax.f32 %v361, 0.0
        %v374 = vmax.f32 %v366, 0.0
        %v375 = vmax.f32 %v369, 0.0
        %v376 = vpack.c.bf16 %v373, %v372
        %v377 = vpack.c.bf16 %v375, %v374
        %v378 = vld [vmem:[#allocation7] sm:$0xf]
        %v379 = vld [vmem:[#allocation7 + $0x4] sm:$0xf]
        %v380 = vld [vmem:[#allocation7 + $0x8] sm:$0xf]
        %v381 = vld [vmem:[#allocation7 + $0xc] sm:$0xf]
        %v382 = vld [vmem:[#allocation7 + $0x10] sm:$0xf]
        %v383 = vld [vmem:[#allocation7 + $0x14] sm:$0xf]
        %v384 = vld [vmem:[#allocation7 + $0x18] sm:$0xf]
        %v385 = vld [vmem:[#allocation7 + $0x1c] sm:$0xf]
        %v386 = vld [vmem:[#allocation7 + $0x20] sm:$0xf]
        %v387 = vld [vmem:[#allocation7 + $0x24] sm:$0xf]
        %v388 = vld [vmem:[#allocation7 + $0x28] sm:$0xf]
        %v389 = vld [vmem:[#allocation7 + $0x2c] sm:$0xf]
        %v390 = vld [vmem:[#allocation7 + $0x30] sm:$0xf]
        %v391 = vld [vmem:[#allocation7 + $0x34] sm:$0xf]
        %v392 = vld [vmem:[#allocation7 + $0x38] sm:$0xf]
        %v393 = vld [vmem:[#allocation7 + $0x3c] sm:$0xf]
        %v394 = vld [vmem:[%s3 + $0x1] sm:$0x1]
        %v395 = vlaneseq
        %v396 = vshrl.u32 %v395, 7
        %v397 = vsub.s32 0, %v396
        %v398 = vrot.slane %v394, %v397
        %v415 = vunpack.c.l.b16 %v378
        %v416 = vunpack.c.l.b16 %v379
        %v417 = vunpack.c.l.b16 %v380
        %v418 = vunpack.c.l.b16 %v381
        %v419 = vunpack.c.l.b16 %v382
        %v420 = vunpack.c.l.b16 %v383
        %v421 = vunpack.c.l.b16 %v384
        %v422 = vunpack.c.l.b16 %v385
        %v423 = vunpack.c.l.b16 %v386
        %v424 = vunpack.c.l.b16 %v387
        %v425 = vunpack.c.l.b16 %v388
        %v426 = vunpack.c.l.b16 %v389
        %v427 = vunpack.c.l.b16 %v390
        %v428 = vunpack.c.l.b16 %v391
        %v429 = vunpack.c.l.b16 %v392
        %v430 = vunpack.c.l.b16 %v393
        %v431 = vpack.c.b16 %v416, %v415
        %v432 = vpack.c.b16 %v418, %v417
        %v433 = vpack.c.b16 %v420, %v419
        %v434 = vpack.c.b16 %v422, %v421
        %v435 = vpack.c.b16 %v424, %v423
        %v436 = vpack.c.b16 %v426, %v425
        %v437 = vpack.c.b16 %v428, %v427
        %v438 = vpack.c.b16 %v430, %v429
        %447 = vmatprep.subr.bf16.mxu0 0
        %448 = vmatpush1.bf16.msra.mxu0 %v431
        %449 = vmatprep.subr.bf16.mxu0 0
        %450 = vmatpush1.bf16.msra.mxu0 %v432
        %451 = vmatprep.subr.bf16.mxu0 0
        %452 = vmatpush1.bf16.msra.mxu0 %v433
        %453 = vmatprep.subr.bf16.mxu0 0
        %454 = vmatpush1.bf16.msra.mxu0 %v434
        %455 = vmatprep.subr.bf16.mxu0 0
        %456 = vmatpush1.bf16.msra.mxu0 %v435
        %457 = vmatprep.subr.bf16.mxu0 0
        %458 = vmatpush1.bf16.msra.mxu0 %v436
        %459 = vmatprep.subr.bf16.mxu0 0
        %460 = vmatpush1.bf16.msra.mxu0 %v437
        %461 = vmatprep.subr.bf16.mxu0 0
        %462 = vmatpush1.bf16.msra.mxu0 %v438
        %463 = vmatprep.subr.bf16.mxu0 0
        %464 = vmatpush1.bf16.msra.mxu0 0
        %465 = vmatprep.subr.bf16.mxu0 0
        %466 = vmatpush1.bf16.msra.mxu0 0
        %467 = vmatprep.subr.bf16.mxu0 0
        %468 = vmatpush1.bf16.msra.mxu0 0
        %469 = vmatprep.subr.bf16.mxu0 0
        %470 = vmatpush1.bf16.msra.mxu0 0
        %471 = vmatprep.subr.bf16.mxu0 0
        %472 = vmatpush1.bf16.msra.mxu0 0
        %473 = vmatprep.subr.bf16.mxu0 0
        %474 = vmatpush1.bf16.msra.mxu0 0
        %475 = vmatprep.subr.bf16.mxu0 0
        %476 = vmatpush1.bf16.msra.mxu0 0
        %477 = vmatprep.subr.bf16.mxu0 0
        %478 = vmatpush1.bf16.msra.mxu0 0
        %479 = vmatprep.mubr.bf16.mxu0 0
        %480 = vmatmul.mubr.bf16.gmra.mrb[0].mxu0 %v376
        %v481 = vpop.f32.mrb[0].mxu0
        %v482 = vadd.f32 %v398, %v481
        %v483 = vpop.f32.mrb[0].mxu0
        %v484 = vpop.f32.mrb[0].mxu0
        %v485 = vadd.f32 %v398, %v484
        %v486 = vpop.f32.mrb[0].mxu0
        %487 = vmatprep.mubr.bf16.mxu0 0
        %488 = vmatmul.mubr.bf16.gmra.mrb[0].mxu0 %v377
        %v489 = vpop.f32.mrb[0].mxu0
        %v490 = vadd.f32 %v398, %v489
        %v491 = vpop.f32.mrb[0].mxu0
        %v492 = vpop.f32.mrb[0].mxu0
        %v493 = vadd.f32 %v398, %v492
        %v494 = vpop.f32.mrb[0].mxu0
        %495 = vdwg.mxu0
        %v496 = vadd.f32 %v482, %v248
        %v497 = vadd.f32 %v485, %v249
        %v498 = vadd.f32 %v490, %v250
        %v499 = vadd.f32 %v493, %v251
        %500 = vadd.xlane.f32.xlu0 %v496
        %v501 = vpop.xlane.xlu0 %500
        %502 = vadd.xlane.f32.xlu0 %v497
        %v503 = vpop.xlane.xlu0 %502
        %504 = vadd.xlane.f32.xlu0 %v498
        %v505 = vpop.xlane.xlu0 %504
        %506 = vadd.xlane.f32.xlu0 %v499
        %v507 = vpop.xlane.xlu0 %506
        %v508 = vrcp.pop 128.0
        %v509 = vmul.f32 %v501, %v508
        %v510 = vmul.f32 %v503, %v508
        %v511 = vmul.f32 %v505, %v508
        %v512 = vmul.f32 %v507, %v508
        %v513 = vsub.f32 %v496, %v509
        %v514 = vsub.f32 %v497, %v510
        %v515 = vsub.f32 %v498, %v511
        %v516 = vsub.f32 %v499, %v512
        %v517 = vmul.f32 %v513, %v513
        %v518 = vmul.f32 %v514, %v514
        %v519 = vmul.f32 %v515, %v515
        %v520 = vmul.f32 %v516, %v516
        %521 = vadd.xlane.f32.xlu0 %v517
        %v522 = vpop.xlane.xlu0 %521
        %523 = vadd.xlane.f32.xlu0 %v518
        %v524 = vpop.xlane.xlu0 %523
        %525 = vadd.xlane.f32.xlu0 %v519
        %v526 = vpop.xlane.xlu0 %525
        %527 = vadd.xlane.f32.xlu0 %v520
        %v528 = vpop.xlane.xlu0 %527
        %v529 = vmul.f32 %v522, %v508
        %v530 = vmul.f32 %v524, %v508
        %v531 = vmul.f32 %v526, %v508
        %v532 = vmul.f32 %v528, %v508
        %v533 = vadd.f32 %v529, 1e-05
        %v534 = vadd.f32 %v530, 1e-05
        %v535 = vadd.f32 %v531, 1e-05
        %v536 = vadd.f32 %v532, 1e-05
        %v537 = vrsqrt.pop %v533
        %v538 = vrsqrt.pop %v534
        %v539 = vrsqrt.pop %v535
        %v540 = vrsqrt.pop %v536
        %v541 = vmul.f32 %v513, %v537
        %v542 = vmul.f32 %v514, %v538
        %v543 = vmul.f32 %v515, %v539
        %v544 = vmul.f32 %v516, %v540
        %v545 = vld [vmem:[%s3 + $0x2] sm:$0x1]
        %v546 = vlaneseq
        %v547 = vshrl.u32 %v546, 7
        %v548 = vsub.s32 0, %v547
        %v549 = vrot.slane %v545, %v548
        %v550 = vmul.f32 %v541, %v549
        %v551 = vmul.f32 %v542, %v549
        %v552 = vmul.f32 %v543, %v549
        %v553 = vmul.f32 %v544, %v549
        %v554 = vld [vmem:[%s3 + $0x3] sm:$0x1]
        %v555 = vlaneseq
        %v556 = vshrl.u32 %v555, 7
        %v557 = vsub.s32 0, %v556
        %v558 = vrot.slane %v554, %v557
        %v559 = vadd.f32 %v550, %v558
        %v560 = vadd.f32 %v551, %v558
        %v561 = vadd.f32 %v552, %v558
        %v562 = vadd.f32 %v553, %v558
        %v563 = vmax.f32 %v559, 0.0
        %v564 = vmax.f32 %v560, 0.0
        %v565 = vmax.f32 %v561, 0.0
        %v566 = vmax.f32 %v562, 0.0
        %567 = vst [vmem:[%s244] sm:$0xff] %v563
        %568 = vst [vmem:[%s244 + $0x8] sm:$0xff] %v564
        %569 = vst [vmem:[%s244 + $0x10] sm:$0xff] %v565
        %570 = vst [vmem:[%s244 + $0x18] sm:$0xff] %v566
        %s571 = sand.u32 %s119, 1
        %s572 = scalar_lea.sflag [#allocation4], %s571
        %s573 = sand.u32 %s119, 1
        %s574 = smul.addr %s573, 32
        %s575 = scalar_lea.vmem [#allocation8], %s574
        // Predicated region
        $region49: #{tpu_custom_call.1} parent=35 // pred_check
          %p576 = pneg %p129
        $region50: #{tpu_custom_call.1} parent=35 // pred_check_branch
          %578 = sbr.rel (%p576) target = $region52
        $region51: #{tpu_custom_call.1} parent=35 // pred_region
          %s579 = smul.u32 4, %s22
          %s581 = ssub.s32 512, 512
          %582 = vsyncadd %s572, %s581
          %s583 = smul.addr %s579, 128
          %s584 = scalar_lea.hbm %s4, %s583
          %s585 = sshll.u32 %s575, 4
          %s586 = int_to_ptr.vmem [resolvable:$true] %s585
          %591 = dma.vmem_to_hbm [thread:$0]  %s586, 512, %s584, %s572, 128, 128, 8
        $region52: #{tpu_custom_call.1} parent=35 // pred_fallthru
          _
      $region36: #{tpu_custom_call.1} parent=5 // pred_fallthru
        _
      %p592 = scmp.le.s32.totalorder 2, %s17
      // Predicated region
      $region53: #{tpu_custom_call.1} parent=5 // pred_check
        %p593 = pneg %p592
      $region54: #{tpu_custom_call.1} parent=5 // pred_check_branch
        %595 = sbr.rel (%p593) target = $region56
      $region55: #{tpu_custom_call.1} parent=5 // pred_region
        %s596 = ssub.s32 %s17, 2
        // Predicated region
        $region57: #{tpu_custom_call.1} parent=55 // pred_check
          %p597 = pneg %p135
        $region58: #{tpu_custom_call.1} parent=55 // pred_check_branch
          %599 = sbr.rel (%p597) target = $region60
        $region59: #{tpu_custom_call.1} parent=55 // pred_region
          %s600 = sand.u32 %s120, 1
          %s601 = scalar_lea.sflag [#allocation4], %s600
          %s602 = sand.u32 %s120, 1
          %s603 = smul.addr %s602, 32
          %s604 = scalar_lea.vmem [#allocation8], %s603
          %605 = dma.done %s601, 512
        $region60: #{tpu_custom_call.1} parent=55 // pred_fallthru
          _
      $region56: #{tpu_custom_call.1} parent=5 // pred_fallthru
        _
    $region6: #{tpu_custom_call.1} parent=1 // loop_footer
      %s21 = sadd.s32 1, %s17
    $region7: #{tpu_custom_call.1} parent=1 // loop_footer_branch
      %16 = sbr.rel target = $region3
    $region8: #{tpu_custom_call.1} parent=1 // loop_exit
      _
    %606 = vsyncpa [#allocation3], 1
    %s607 = scalar_lea.sflag [#allocation3], 1
    %608 = vsyncpa %s607, 1
    %609 = vsyncpa [#allocation6], 1
    %610 = vsyncpa [#allocation4], 1
    %s611 = scalar_lea.sflag [#allocation4], 1
    %612 = vsyncpa %s611, 1

</llo_original>
